<compile_context>
chip_gen: v7x
topology: tpu7x:2x2x1
jax: 0.10.0
libtpu: 0.0.40
codegen_flags: <defaults>
</compile_context>

<pallas_src>
import functools

import numpy as np
import jax
import jax.numpy as jnp
from jax.experimental import pallas as pl
from jax.experimental.pallas import tpu as pltpu


def _round_up(n, m):
    return ((n + m - 1) // m) * m


def _tap_masks(H, W):
    """(9, H*W) f32 validity masks for the 3x3 taps, tap-major ((oy+1)*3+(ox+1))."""
    yy, xx = np.meshgrid(np.arange(H), np.arange(W), indexing="ij")
    masks = []
    for oy in (-1, 0, 1):
        for ox in (-1, 0, 1):
            valid = ((yy + oy >= 0) & (yy + oy < H) &
                     (xx + ox >= 0) & (xx + ox < W))
            masks.append(valid.reshape(-1))
    return jnp.asarray(np.stack(masks).astype(np.float32))


def _resblock_kernel(mask_ref, x_ref, w1_ref, b1_ref, w2_ref, b2_ref,
                     o_ref, slab_ref, *, W, C):
    """One batch image per grid step: conv3x3 -> ReLU -> conv3x3 -> +x -> ReLU.

    x_ref:    (Cp, H*W)    image, channels on sublanes, H*W lane-dense
    w*_ref:   (Cp, 9*Cp)   im2col weights, tap-major contraction axis
    b*_ref:   (Cp, 1)
    mask_ref: (9, H*W)     per-tap edge-validity masks
    o_ref:    (C,  H*W)    un-padded output channels
    slab_ref: (9*Cp, H*W)  reused VMEM im2col slab
    """
    Cp, HW = x_ref.shape
    x = x_ref[...]                                        # (Cp, HW) f32

    def conv3x3(v, w_ref, b_ref):
        # Build the im2col slab: 9 rolled + masked copies of v.
        t = 0
        for oy in (-1, 0, 1):
            for ox in (-1, 0, 1):
                shift = (-(oy * W + ox)) % HW             # rolled[p] = v[p + oy*W + ox]
                tap = v if shift == 0 else pltpu.roll(v, shift, axis=1)
                if oy != 0 or ox != 0:                    # zero out-of-image taps
                    tap = tap * mask_ref[pl.ds(t, 1), :]
                slab_ref[pl.ds(t * Cp, Cp), :] = tap      # 8-sublane-aligned store
                t += 1
        # Single im2col matmul per conv: K = 9*Cp, lane-dense N = H*W.
        acc = jnp.dot(w_ref[...], slab_ref[...],
                      preferred_element_type=jnp.float32)
        return acc + b_ref[...]                           # bias broadcast along lanes

    y1 = jnp.maximum(conv3x3(x, w1_ref, b1_ref), 0.0)     # conv1 + ReLU
    y2 = conv3x3(y1, w2_ref, b2_ref)                      # conv2
    out = jnp.maximum(y2 + x, 0.0)                        # residual + final ReLU
    o_ref[...] = out[:C, :].astype(o_ref.dtype)


def resblock_forward(x_nchw, w1_oihw, b1, w2_oihw, b2):
    """x: (B, C, H, W) f32; w*: (C, C, 3, 3) OIHW; b*: (C,). Returns NCHW."""
    B, C, H, W = x_nchw.shape
    HW = H * W
    Cp = _round_up(C, 8)                                  # sublane tile

    # Flatten spatial onto the lane axis; pad channels to the sublane tile.
    x3 = x_nchw.reshape(B, C, HW).astype(jnp.float32)
    if Cp != C:
        x3 = jnp.pad(x3, ((0, 0), (0, Cp - C), (0, 0)))

    def pack_w(w):
        wp = jnp.zeros((Cp, Cp, 3, 3), jnp.float32).at[:C, :C].set(
            w.astype(jnp.float32))
        # (O, I, ky, kx) -> (O, ky, kx, I) -> (O, 9*I): tap-major contraction axis.
        return jnp.transpose(wp, (0, 2, 3, 1)).reshape(Cp, 9 * Cp)

    def pack_b(b):
        return jnp.zeros((Cp, 1), jnp.float32).at[:C, 0].set(b.astype(jnp.float32))

    w1m, w2m = pack_w(w1_oihw), pack_w(w2_oihw)
    b1c, b2c = pack_b(b1), pack_b(b2)
    masks = _tap_masks(H, W)                              # (9, HW)

    kernel = functools.partial(_resblock_kernel, W=W, C=C)
    out3 = pl.pallas_call(
        kernel,
        out_shape=jax.ShapeDtypeStruct((B, C, HW), x_nchw.dtype),
        grid=(B,),
        in_specs=[
            pl.BlockSpec((9, HW), lambda b: (0, 0)),            # tap masks (resident)
            pl.BlockSpec((None, Cp, HW), lambda b: (b, 0, 0)),  # one image per step
            pl.BlockSpec((Cp, 9 * Cp), lambda b: (0, 0)),       # conv1 weights
            pl.BlockSpec((Cp, 1), lambda b: (0, 0)),            # conv1 bias
            pl.BlockSpec((Cp, 9 * Cp), lambda b: (0, 0)),       # conv2 weights
            pl.BlockSpec((Cp, 1), lambda b: (0, 0)),            # conv2 bias
        ],
        out_specs=pl.BlockSpec((None, C, HW), lambda b: (b, 0, 0)),
        scratch_shapes=[pltpu.VMEM((9 * Cp, HW), jnp.float32)],  # reused im2col slab
        compiler_params=pltpu.CompilerParams(
            dimension_semantics=("parallel",),                   # pipelining + v7x megacore
        ),
    )(masks, x3, w1m, b1c, w2m, b2c)

    return out3.reshape(B, C, H, W)


def _resblock_ref(x, w1, b1, w2, b2):
    """Pure-JAX reference in NCHW (mirrors the PyTorch forward)."""
    dn = ("NCHW", "OIHW", "NCHW")
    y = jax.lax.conv_general_dilated(x, w1, (1, 1), ((1, 1), (1, 1)),
                                     dimension_numbers=dn,
                                     precision=jax.lax.Precision.HIGHEST)
    y = jnp.maximum(y + b1[None, :, None, None], 0.0)
    y = jax.lax.conv_general_dilated(y, w2, (1, 1), ((1, 1), (1, 1)),
                                     dimension_numbers=dn,
                                     precision=jax.lax.Precision.HIGHEST)
    y = y + b2[None, :, None, None]
    return jnp.maximum(y + x, 0.0)


if __name__ == "__main__":
    B, C, H, W = 2, 4, 16, 16
    key = jax.random.PRNGKey(0)
    kx, k1, kb1, k2, kb2 = jax.random.split(key, 5)

    # Deterministic synthetic parameters (Conv2d(C, C, 3, padding=1) shapes).
    fan_in = C * 3 * 3
    bound = 1.0 / (fan_in ** 0.5)
    x = jax.random.normal(kx, (B, C, H, W), dtype=jnp.float32)
    w1 = jax.random.uniform(k1, (C, C, 3, 3), jnp.float32, -bound, bound)
    b1 = jax.random.uniform(kb1, (C,), jnp.float32, -bound, bound)
    w2 = jax.random.uniform(k2, (C, C, 3, 3), jnp.float32, -bound, bound)
    b2 = jax.random.uniform(kb2, (C,), jnp.float32, -bound, bound)

    out = jax.jit(resblock_forward)(x, w1, b1, w2, b2)
    out = jax.block_until_ready(out)

    ref = _resblock_ref(x, w1, b1, w2, b2)
    assert out.shape == (B, C, H, W)
    assert jnp.allclose(out, ref, atol=2e-4, rtol=2e-4), "mismatch vs reference"

    print("KERNEL_OK")
</pallas_src>

<mosaic_0001>
module attributes {stable_mosaic.version = 11 : i64} {
  func.func @_resblock_kernel(%arg0: i32, %arg1: memref<9x256xf32, #tpu.memory_space<vmem>>, %arg2: memref<1x8x256xf32, #tpu.memory_space<vmem>>, %arg3: memref<8x72xf32, #tpu.memory_space<vmem>>, %arg4: memref<8x1xf32, #tpu.memory_space<vmem>>, %arg5: memref<8x72xf32, #tpu.memory_space<vmem>>, %arg6: memref<8x1xf32, #tpu.memory_space<vmem>>, %arg7: memref<1x4x256xf32, #tpu.memory_space<vmem>>, %arg8: memref<72x256xf32, #tpu.memory_space<vmem>>) attributes {dimension_semantics = [#tpu.dimension_semantics<parallel>], iteration_bounds = array<i64: 2>, scalar_prefetch = 0 : i64, scratch_operands = 1 : i64, tpu.core_type = #tpu.core_type<tc>, window_params = [{pipeline_mode = #tpu.pipeline_mode<synchronous>, transform_indices = @transform_0, window_bounds = array<i64: 9, 256>}, {transform_indices = @transform_1, window_bounds = array<i64: 1, 8, 256>}, {pipeline_mode = #tpu.pipeline_mode<synchronous>, transform_indices = @transform_2, window_bounds = array<i64: 8, 72>}, {pipeline_mode = #tpu.pipeline_mode<synchronous>, transform_indices = @transform_3, window_bounds = array<i64: 8, 1>}, {pipeline_mode = #tpu.pipeline_mode<synchronous>, transform_indices = @transform_4, window_bounds = array<i64: 8, 72>}, {pipeline_mode = #tpu.pipeline_mode<synchronous>, transform_indices = @transform_5, window_bounds = array<i64: 8, 1>}, {transform_indices = @transform_6, window_bounds = array<i64: 1, 4, 256>}]} {
    %c0 = arith.constant 0 : index
    %c0_0 = arith.constant 0 : index
    %c0_1 = arith.constant 0 : index
    %0 = vector.load %arg2[%c0, %c0_0, %c0_1] : memref<1x8x256xf32, #tpu.memory_space<vmem>>, vector<1x8x256xf32>
    %1 = vector.shape_cast %0 : vector<1x8x256xf32> to vector<8x256xf32>
    %c17_i32 = arith.constant 17 : i32
    %2 = tpu.dynamic_rotate %1 by %c17_i32 dim 1 : vector<8x256xf32>, i32 -> vector<8x256xf32>
    %c0_2 = arith.constant 0 : index
    %c0_3 = arith.constant 0 : index
    %3 = vector.load %arg1[%c0_2, %c0_3] : memref<9x256xf32, #tpu.memory_space<vmem>>, vector<1x256xf32>
    %4 = vector.broadcast %3 : vector<1x256xf32> to vector<8x256xf32>
    %5 = arith.mulf %2, %4 : vector<8x256xf32>
    %c0_4 = arith.constant 0 : index
    %c0_5 = arith.constant 0 : index
    %6 = vector.load %arg8[%c0_4, %c0_5] : memref<72x256xf32, #tpu.memory_space<vmem>>, vector<8x256xf32>
    tpu.vector_store %arg8[%c0_4, %c0_5], %5 {strides = array<i32>} : memref<72x256xf32, #tpu.memory_space<vmem>>, vector<8x256xf32>,
    %c16_i32 = arith.constant 16 : i32
    %7 = tpu.dynamic_rotate %1 by %c16_i32 dim 1 : vector<8x256xf32>, i32 -> vector<8x256xf32>
    %c1 = arith.constant 1 : index
    %c0_6 = arith.constant 0 : index
    %8 = vector.load %arg1[%c1, %c0_6] : memref<9x256xf32, #tpu.memory_space<vmem>>, vector<1x256xf32>
    %9 = vector.broadcast %8 : vector<1x256xf32> to vector<8x256xf32>
    %10 = arith.mulf %7, %9 : vector<8x256xf32>
    %c8 = arith.constant 8 : index
    %c0_7 = arith.constant 0 : index
    %11 = vector.load %arg8[%c8, %c0_7] : memref<72x256xf32, #tpu.memory_space<vmem>>, vector<8x256xf32>
    tpu.vector_store %arg8[%c8, %c0_7], %10 {strides = array<i32>} : memref<72x256xf32, #tpu.memory_space<vmem>>, vector<8x256xf32>,
    %c15_i32 = arith.constant 15 : i32
    %12 = tpu.dynamic_rotate %1 by %c15_i32 dim 1 : vector<8x256xf32>, i32 -> vector<8x256xf32>
    %c2 = arith.constant 2 : index
    %c0_8 = arith.constant 0 : index
    %13 = vector.load %arg1[%c2, %c0_8] : memref<9x256xf32, #tpu.memory_space<vmem>>, vector<1x256xf32>
    %14 = vector.broadcast %13 : vector<1x256xf32> to vector<8x256xf32>
    %15 = arith.mulf %12, %14 : vector<8x256xf32>
    %c16 = arith.constant 16 : index
    %c0_9 = arith.constant 0 : index
    %16 = vector.load %arg8[%c16, %c0_9] : memref<72x256xf32, #tpu.memory_space<vmem>>, vector<8x256xf32>
    tpu.vector_store %arg8[%c16, %c0_9], %15 {strides = array<i32>} : memref<72x256xf32, #tpu.memory_space<vmem>>, vector<8x256xf32>,
    %c1_i32 = arith.constant 1 : i32
    %17 = tpu.dynamic_rotate %1 by %c1_i32 dim 1 : vector<8x256xf32>, i32 -> vector<8x256xf32>
    %c3 = arith.constant 3 : index
    %c0_10 = arith.constant 0 : index
    %18 = vector.load %arg1[%c3, %c0_10] : memref<9x256xf32, #tpu.memory_space<vmem>>, vector<1x256xf32>
    %19 = vector.broadcast %18 : vector<1x256xf32> to vector<8x256xf32>
    %20 = arith.mulf %17, %19 : vector<8x256xf32>
    %c24 = arith.constant 24 : index
    %c0_11 = arith.constant 0 : index
    %21 = vector.load %arg8[%c24, %c0_11] : memref<72x256xf32, #tpu.memory_space<vmem>>, vector<8x256xf32>
    tpu.vector_store %arg8[%c24, %c0_11], %20 {strides = array<i32>} : memref<72x256xf32, #tpu.memory_space<vmem>>, vector<8x256xf32>,
    %c32 = arith.constant 32 : index
    %c0_12 = arith.constant 0 : index
    %22 = vector.load %arg8[%c32, %c0_12] : memref<72x256xf32, #tpu.memory_space<vmem>>, vector<8x256xf32>
    tpu.vector_store %arg8[%c32, %c0_12], %1 {strides = array<i32>} : memref<72x256xf32, #tpu.memory_space<vmem>>, vector<8x256xf32>,
    %c255_i32 = arith.constant 255 : i32
    %23 = tpu.dynamic_rotate %1 by %c255_i32 dim 1 : vector<8x256xf32>, i32 -> vector<8x256xf32>
    %c5 = arith.constant 5 : index
    %c0_13 = arith.constant 0 : index
    %24 = vector.load %arg1[%c5, %c0_13] : memref<9x256xf32, #tpu.memory_space<vmem>>, vector<1x256xf32>
    %25 = vector.broadcast %24 : vector<1x256xf32> to vector<8x256xf32>
    %26 = arith.mulf %23, %25 : vector<8x256xf32>
    %c40 = arith.constant 40 : index
    %c0_14 = arith.constant 0 : index
    %27 = vector.load %arg8[%c40, %c0_14] : memref<72x256xf32, #tpu.memory_space<vmem>>, vector<8x256xf32>
    tpu.vector_store %arg8[%c40, %c0_14], %26 {strides = array<i32>} : memref<72x256xf32, #tpu.memory_space<vmem>>, vector<8x256xf32>,
    %c241_i32 = arith.constant 241 : i32
    %28 = tpu.dynamic_rotate %1 by %c241_i32 dim 1 : vector<8x256xf32>, i32 -> vector<8x256xf32>
    %c6 = arith.constant 6 : index
    %c0_15 = arith.constant 0 : index
    %29 = vector.load %arg1[%c6, %c0_15] : memref<9x256xf32, #tpu.memory_space<vmem>>, vector<1x256xf32>
    %30 = vector.broadcast %29 : vector<1x256xf32> to vector<8x256xf32>
    %31 = arith.mulf %28, %30 : vector<8x256xf32>
    %c48 = arith.constant 48 : index
    %c0_16 = arith.constant 0 : index
    %32 = vector.load %arg8[%c48, %c0_16] : memref<72x256xf32, #tpu.memory_space<vmem>>, vector<8x256xf32>
    tpu.vector_store %arg8[%c48, %c0_16], %31 {strides = array<i32>} : memref<72x256xf32, #tpu.memory_space<vmem>>, vector<8x256xf32>,
    %c240_i32 = arith.constant 240 : i32
    %33 = tpu.dynamic_rotate %1 by %c240_i32 dim 1 : vector<8x256xf32>, i32 -> vector<8x256xf32>
    %c7 = arith.constant 7 : index
    %c0_17 = arith.constant 0 : index
    %34 = vector.load %arg1[%c7, %c0_17] : memref<9x256xf32, #tpu.memory_space<vmem>>, vector<1x256xf32>
    %35 = vector.broadcast %34 : vector<1x256xf32> to vector<8x256xf32>
    %36 = arith.mulf %33, %35 : vector<8x256xf32>
    %c56 = arith.constant 56 : index
    %c0_18 = arith.constant 0 : index
    %37 = vector.load %arg8[%c56, %c0_18] : memref<72x256xf32, #tpu.memory_space<vmem>>, vector<8x256xf32>
    tpu.vector_store %arg8[%c56, %c0_18], %36 {strides = array<i32>} : memref<72x256xf32, #tpu.memory_space<vmem>>, vector<8x256xf32>,
    %c239_i32 = arith.constant 239 : i32
    %38 = tpu.dynamic_rotate %1 by %c239_i32 dim 1 : vector<8x256xf32>, i32 -> vector<8x256xf32>
    %c8_19 = arith.constant 8 : index
    %c0_20 = arith.constant 0 : index
    %39 = vector.load %arg1[%c8_19, %c0_20] : memref<9x256xf32, #tpu.memory_space<vmem>>, vector<1x256xf32>
    %40 = vector.broadcast %39 : vector<1x256xf32> to vector<8x256xf32>
    %41 = arith.mulf %38, %40 : vector<8x256xf32>
    %c64 = arith.constant 64 : index
    %c0_21 = arith.constant 0 : index
    %42 = vector.load %arg8[%c64, %c0_21] : memref<72x256xf32, #tpu.memory_space<vmem>>, vector<8x256xf32>
    tpu.vector_store %arg8[%c64, %c0_21], %41 {strides = array<i32>} : memref<72x256xf32, #tpu.memory_space<vmem>>, vector<8x256xf32>,
    %c0_22 = arith.constant 0 : index
    %c0_23 = arith.constant 0 : index
    %43 = vector.load %arg3[%c0_22, %c0_23] : memref<8x72xf32, #tpu.memory_space<vmem>>, vector<8x72xf32>
    %c0_24 = arith.constant 0 : index
    %c0_25 = arith.constant 0 : index
    %44 = vector.load %arg8[%c0_24, %c0_25] : memref<72x256xf32, #tpu.memory_space<vmem>>, vector<72x256xf32>
    %cst = arith.constant dense<0.000000e+00> : vector<8x256xf32>
    %45 = tpu.matmul %43, %44, %cst {dimension_numbers = #tpu.dot_dimension_numbers<[1], [0], [0], [1], [0, 0, 1, 1], [], []>} : vector<8x72xf32>, vector<72x256xf32>, vector<8x256xf32> -> vector<8x256xf32>
    %c0_26 = arith.constant 0 : index
    %c0_27 = arith.constant 0 : index
    %46 = vector.load %arg4[%c0_26, %c0_27] : memref<8x1xf32, #tpu.memory_space<vmem>>, vector<8x1xf32>
    %47 = vector.broadcast %46 : vector<8x1xf32> to vector<8x256xf32>
    %48 = arith.addf %45, %47 : vector<8x256xf32>
    %cst_28 = arith.constant 0.000000e+00 : f32
    %49 = vector.broadcast %cst_28 : f32 to vector<8x256xf32>
    %50 = arith.maximumf %48, %49 : vector<8x256xf32>
    %c17_i32_29 = arith.constant 17 : i32
    %51 = tpu.dynamic_rotate %50 by %c17_i32_29 dim 1 : vector<8x256xf32>, i32 -> vector<8x256xf32>
    %c0_30 = arith.constant 0 : index
    %c0_31 = arith.constant 0 : index
    %52 = vector.load %arg1[%c0_30, %c0_31] : memref<9x256xf32, #tpu.memory_space<vmem>>, vector<1x256xf32>
    %53 = vector.broadcast %52 : vector<1x256xf32> to vector<8x256xf32>
    %54 = arith.mulf %51, %53 : vector<8x256xf32>
    %c0_32 = arith.constant 0 : index
    %c0_33 = arith.constant 0 : index
    %55 = vector.load %arg8[%c0_32, %c0_33] : memref<72x256xf32, #tpu.memory_space<vmem>>, vector<8x256xf32>
    tpu.vector_store %arg8[%c0_32, %c0_33], %54 {strides = array<i32>} : memref<72x256xf32, #tpu.memory_space<vmem>>, vector<8x256xf32>,
    %c16_i32_34 = arith.constant 16 : i32
    %56 = tpu.dynamic_rotate %50 by %c16_i32_34 dim 1 : vector<8x256xf32>, i32 -> vector<8x256xf32>
    %c1_35 = arith.constant 1 : index
    %c0_36 = arith.constant 0 : index
    %57 = vector.load %arg1[%c1_35, %c0_36] : memref<9x256xf32, #tpu.memory_space<vmem>>, vector<1x256xf32>
    %58 = vector.broadcast %57 : vector<1x256xf32> to vector<8x256xf32>
    %59 = arith.mulf %56, %58 : vector<8x256xf32>
    %c8_37 = arith.constant 8 : index
    %c0_38 = arith.constant 0 : index
    %60 = vector.load %arg8[%c8_37, %c0_38] : memref<72x256xf32, #tpu.memory_space<vmem>>, vector<8x256xf32>
    tpu.vector_store %arg8[%c8_37, %c0_38], %59 {strides = array<i32>} : memref<72x256xf32, #tpu.memory_space<vmem>>, vector<8x256xf32>,
    %c15_i32_39 = arith.constant 15 : i32
    %61 = tpu.dynamic_rotate %50 by %c15_i32_39 dim 1 : vector<8x256xf32>, i32 -> vector<8x256xf32>
    %c2_40 = arith.constant 2 : index
    %c0_41 = arith.constant 0 : index
    %62 = vector.load %arg1[%c2_40, %c0_41] : memref<9x256xf32, #tpu.memory_space<vmem>>, vector<1x256xf32>
    %63 = vector.broadcast %62 : vector<1x256xf32> to vector<8x256xf32>
    %64 = arith.mulf %61, %63 : vector<8x256xf32>
    %c16_42 = arith.constant 16 : index
    %c0_43 = arith.constant 0 : index
    %65 = vector.load %arg8[%c16_42, %c0_43] : memref<72x256xf32, #tpu.memory_space<vmem>>, vector<8x256xf32>
    tpu.vector_store %arg8[%c16_42, %c0_43], %64 {strides = array<i32>} : memref<72x256xf32, #tpu.memory_space<vmem>>, vector<8x256xf32>,
    %c1_i32_44 = arith.constant 1 : i32
    %66 = tpu.dynamic_rotate %50 by %c1_i32_44 dim 1 : vector<8x256xf32>, i32 -> vector<8x256xf32>
    %c3_45 = arith.constant 3 : index
    %c0_46 = arith.constant 0 : index
    %67 = vector.load %arg1[%c3_45, %c0_46] : memref<9x256xf32, #tpu.memory_space<vmem>>, vector<1x256xf32>
    %68 = vector.broadcast %67 : vector<1x256xf32> to vector<8x256xf32>
    %69 = arith.mulf %66, %68 : vector<8x256xf32>
    %c24_47 = arith.constant 24 : index
    %c0_48 = arith.constant 0 : index
    %70 = vector.load %arg8[%c24_47, %c0_48] : memref<72x256xf32, #tpu.memory_space<vmem>>, vector<8x256xf32>
    tpu.vector_store %arg8[%c24_47, %c0_48], %69 {strides = array<i32>} : memref<72x256xf32, #tpu.memory_space<vmem>>, vector<8x256xf32>,
    %c32_49 = arith.constant 32 : index
    %c0_50 = arith.constant 0 : index
    %71 = vector.load %arg8[%c32_49, %c0_50] : memref<72x256xf32, #tpu.memory_space<vmem>>, vector<8x256xf32>
    tpu.vector_store %arg8[%c32_49, %c0_50], %50 {strides = array<i32>} : memref<72x256xf32, #tpu.memory_space<vmem>>, vector<8x256xf32>,
    %c255_i32_51 = arith.constant 255 : i32
    %72 = tpu.dynamic_rotate %50 by %c255_i32_51 dim 1 : vector<8x256xf32>, i32 -> vector<8x256xf32>
    %c5_52 = arith.constant 5 : index
    %c0_53 = arith.constant 0 : index
    %73 = vector.load %arg1[%c5_52, %c0_53] : memref<9x256xf32, #tpu.memory_space<vmem>>, vector<1x256xf32>
    %74 = vector.broadcast %73 : vector<1x256xf32> to vector<8x256xf32>
    %75 = arith.mulf %72, %74 : vector<8x256xf32>
    %c40_54 = arith.constant 40 : index
    %c0_55 = arith.constant 0 : index
    %76 = vector.load %arg8[%c40_54, %c0_55] : memref<72x256xf32, #tpu.memory_space<vmem>>, vector<8x256xf32>
    tpu.vector_store %arg8[%c40_54, %c0_55], %75 {strides = array<i32>} : memref<72x256xf32, #tpu.memory_space<vmem>>, vector<8x256xf32>,
    %c241_i32_56 = arith.constant 241 : i32
    %77 = tpu.dynamic_rotate %50 by %c241_i32_56 dim 1 : vector<8x256xf32>, i32 -> vector<8x256xf32>
    %c6_57 = arith.constant 6 : index
    %c0_58 = arith.constant 0 : index
    %78 = vector.load %arg1[%c6_57, %c0_58] : memref<9x256xf32, #tpu.memory_space<vmem>>, vector<1x256xf32>
    %79 = vector.broadcast %78 : vector<1x256xf32> to vector<8x256xf32>
    %80 = arith.mulf %77, %79 : vector<8x256xf32>
    %c48_59 = arith.constant 48 : index
    %c0_60 = arith.constant 0 : index
    %81 = vector.load %arg8[%c48_59, %c0_60] : memref<72x256xf32, #tpu.memory_space<vmem>>, vector<8x256xf32>
    tpu.vector_store %arg8[%c48_59, %c0_60], %80 {strides = array<i32>} : memref<72x256xf32, #tpu.memory_space<vmem>>, vector<8x256xf32>,
    %c240_i32_61 = arith.constant 240 : i32
    %82 = tpu.dynamic_rotate %50 by %c240_i32_61 dim 1 : vector<8x256xf32>, i32 -> vector<8x256xf32>
    %c7_62 = arith.constant 7 : index
    %c0_63 = arith.constant 0 : index
    %83 = vector.load %arg1[%c7_62, %c0_63] : memref<9x256xf32, #tpu.memory_space<vmem>>, vector<1x256xf32>
    %84 = vector.broadcast %83 : vector<1x256xf32> to vector<8x256xf32>
    %85 = arith.mulf %82, %84 : vector<8x256xf32>
    %c56_64 = arith.constant 56 : index
    %c0_65 = arith.constant 0 : index
    %86 = vector.load %arg8[%c56_64, %c0_65] : memref<72x256xf32, #tpu.memory_space<vmem>>, vector<8x256xf32>
    tpu.vector_store %arg8[%c56_64, %c0_65], %85 {strides = array<i32>} : memref<72x256xf32, #tpu.memory_space<vmem>>, vector<8x256xf32>,
    %c239_i32_66 = arith.constant 239 : i32
    %87 = tpu.dynamic_rotate %50 by %c239_i32_66 dim 1 : vector<8x256xf32>, i32 -> vector<8x256xf32>
    %c8_67 = arith.constant 8 : index
    %c0_68 = arith.constant 0 : index
    %88 = vector.load %arg1[%c8_67, %c0_68] : memref<9x256xf32, #tpu.memory_space<vmem>>, vector<1x256xf32>
    %89 = vector.broadcast %88 : vector<1x256xf32> to vector<8x256xf32>
    %90 = arith.mulf %87, %89 : vector<8x256xf32>
    %c64_69 = arith.constant 64 : index
    %c0_70 = arith.constant 0 : index
    %91 = vector.load %arg8[%c64_69, %c0_70] : memref<72x256xf32, #tpu.memory_space<vmem>>, vector<8x256xf32>
    tpu.vector_store %arg8[%c64_69, %c0_70], %90 {strides = array<i32>} : memref<72x256xf32, #tpu.memory_space<vmem>>, vector<8x256xf32>,
    %c0_71 = arith.constant 0 : index
    %c0_72 = arith.constant 0 : index
    %92 = vector.load %arg5[%c0_71, %c0_72] : memref<8x72xf32, #tpu.memory_space<vmem>>, vector<8x72xf32>
    %c0_73 = arith.constant 0 : index
    %c0_74 = arith.constant 0 : index
    %93 = vector.load %arg8[%c0_73, %c0_74] : memref<72x256xf32, #tpu.memory_space<vmem>>, vector<72x256xf32>
    %cst_75 = arith.constant dense<0.000000e+00> : vector<8x256xf32>
    %94 = tpu.matmul %92, %93, %cst_75 {dimension_numbers = #tpu.dot_dimension_numbers<[1], [0], [0], [1], [0, 0, 1, 1], [], []>} : vector<8x72xf32>, vector<72x256xf32>, vector<8x256xf32> -> vector<8x256xf32>
    %c0_76 = arith.constant 0 : index
    %c0_77 = arith.constant 0 : index
    %95 = vector.load %arg6[%c0_76, %c0_77] : memref<8x1xf32, #tpu.memory_space<vmem>>, vector<8x1xf32>
    %96 = vector.broadcast %95 : vector<8x1xf32> to vector<8x256xf32>
    %97 = arith.addf %94, %96 : vector<8x256xf32>
    %98 = arith.addf %97, %1 : vector<8x256xf32>
    %cst_78 = arith.constant 0.000000e+00 : f32
    %99 = vector.broadcast %cst_78 : f32 to vector<8x256xf32>
    %100 = arith.maximumf %98, %99 : vector<8x256xf32>
    %101 = vector.extract_strided_slice %100 {offsets = [0, 0], sizes = [4, 256], strides = [1, 1]} : vector<8x256xf32> to vector<4x256xf32>
    %c0_79 = arith.constant 0 : index
    %c0_80 = arith.constant 0 : index
    %c0_81 = arith.constant 0 : index
    %102 = vector.load %arg7[%c0_79, %c0_80, %c0_81] : memref<1x4x256xf32, #tpu.memory_space<vmem>>, vector<1x4x256xf32>
    %103 = vector.shape_cast %102 : vector<1x4x256xf32> to vector<4x256xf32>
    %104 = vector.shape_cast %101 : vector<4x256xf32> to vector<1x4x256xf32>
    tpu.vector_store %arg7[%c0_79, %c0_80, %c0_81], %104 {strides = array<i32>} : memref<1x4x256xf32, #tpu.memory_space<vmem>>, vector<1x4x256xf32>,
    return
  }
  func.func @transform_0(%arg0: i32) -> (i32, i32) {
    %c0_i32 = arith.constant 0 : i32
    %c0_i32_0 = arith.constant 0 : i32
    %c0_i32_1 = arith.constant 0 : i32
    return %c0_i32, %c0_i32_0 : i32, i32
  }
  func.func @transform_1(%arg0: i32) -> (i32, i32, i32) {
    %c0_i32 = arith.constant 0 : i32
    %c0_i32_0 = arith.constant 0 : i32
    %c0_i32_1 = arith.constant 0 : i32
    return %arg0, %c0_i32, %c0_i32_0 : i32, i32, i32
  }
  func.func @transform_2(%arg0: i32) -> (i32, i32) {
    %c0_i32 = arith.constant 0 : i32
    %c0_i32_0 = arith.constant 0 : i32
    %c0_i32_1 = arith.constant 0 : i32
    return %c0_i32, %c0_i32_0 : i32, i32
  }
  func.func @transform_3(%arg0: i32) -> (i32, i32) {
    %c0_i32 = arith.constant 0 : i32
    %c0_i32_0 = arith.constant 0 : i32
    %c0_i32_1 = arith.constant 0 : i32
    return %c0_i32, %c0_i32_0 : i32, i32
  }
  func.func @transform_4(%arg0: i32) -> (i32, i32) {
    %c0_i32 = arith.constant 0 : i32
    %c0_i32_0 = arith.constant 0 : i32
    %c0_i32_1 = arith.constant 0 : i32
    return %c0_i32, %c0_i32_0 : i32, i32
  }
  func.func @transform_5(%arg0: i32) -> (i32, i32) {
    %c0_i32 = arith.constant 0 : i32
    %c0_i32_0 = arith.constant 0 : i32
    %c0_i32_1 = arith.constant 0 : i32
    return %c0_i32, %c0_i32_0 : i32, i32
  }
  func.func @transform_6(%arg0: i32) -> (i32, i32, i32) {
    %c0_i32 = arith.constant 0 : i32
    %c0_i32_0 = arith.constant 0 : i32
    %c0_i32_1 = arith.constant 0 : i32
    return %arg0, %c0_i32, %c0_i32_0 : i32, i32, i32
  }
}

</mosaic_0001>

<llo_original>
// kernel: resblock_forward.1
$region0: #{resblock_forward.1}
  #allocation0 [shape = 'u32[]', space=smem, size = 0x4, offset = 0x4, fixed_abs, tag = 'smem constant byte address 0x4 - core index']
  #allocation1 [shape = 'u32[144,128]{1,0:T(1,128)}', space=vmem, size = 0x12000, scoped, tag = 'internal scratch']
  #allocation2 [shape = 'f32[72,256]{1,0:T(8,128)}', space=vmem, size = 0x12000, scoped, tag = 'scratch operand']
  %s0 = inlined_call_operand.vmem [shape: f32[9,256], index: 0, kind: input, shape index: {}]
  %s1 = inlined_call_operand.vmem [shape: f32[2,8,256], index: 1, kind: input, shape index: {}]
  %s2 = inlined_call_operand.vmem [shape: f32[8,72], index: 2, kind: input, shape index: {}]
  %s3 = inlined_call_operand.vmem [shape: f32[8,1], index: 3, kind: input, shape index: {}]
  %s4 = inlined_call_operand.vmem [shape: f32[8,72], index: 4, kind: input, shape index: {}]
  %s5 = inlined_call_operand.vmem [shape: f32[8,1], index: 5, kind: input, shape index: {}]
  %s6 = inlined_call_operand.vmem [shape: f32[2,4,256], index: 6, kind: output, shape index: {}]
  %s7 = sld [smem:[#allocation0]]
  $region57: #{resblock_forward.1} parent=0
    _
  %s9 = ssub.s32 1, %s7
  %s10 = scalar_select 0, %s9, %s7
  loop: start=0, step=1, limit=4
  $region2: #{resblock_forward.1} parent=0 // loop_pre_header
    _
  $region3: #{resblock_forward.1} parent=0 // loop_header
    %s12 = sphi 0, %s16
    %p13 = scmp.ge.s32.totalorder %s12, 4
    %s20 = sphi 0, %s20
    %s22 = sphi 0, %s20
    %s23 = sphi 0, %s22
    %s37 = sphi 0, %s23
    %s43 = sphi 0, %s45
    %s46 = sphi 0, %s43
    %s47 = sphi 0, %s46
    %s63 = sphi 0, %s47
    %s67 = sphi 0, %s67
    %s69 = sphi 0, %s67
    %s70 = sphi 0, %s69
    %s84 = sphi 0, %s70
    %s88 = sphi 0, %s88
    %s90 = sphi 0, %s88
    %s91 = sphi 0, %s90
    %s105 = sphi 0, %s91
    %s109 = sphi 0, %s109
    %s111 = sphi 0, %s109
    %s112 = sphi 0, %s111
    %s126 = sphi 0, %s112
    %s130 = sphi 0, %s130
    %s132 = sphi 0, %s130
    %s133 = sphi 0, %s132
    %s147 = sphi 0, %s133
    %s153 = sphi 0, %s155
    %s156 = sphi 0, %s153
    %s157 = sphi 0, %s156
    %s173 = sphi 0, %s157
  $region4: #{resblock_forward.1} parent=0 // loop_header_branch
    %15 = sbr.rel (%p13) target = $region8
  $region5: #{resblock_forward.1} parent=0 // loop_body
    %s17 = ssub.s32 %s12, 1
    %s18 = ssub.s32 %s12, 2
    %s19 = sadd.s32 %s12, 1
    %s21 = sadd.s32 %s20, 1
    %p24 = scmp.eq.s32.totalorder %s12, 1
    %p25 = scmp.ne.s32.totalorder %s20, %s22
    %p26 = scmp.eq.s32.totalorder %s12, 0
    %p27 = por %p25, %p26
    %p28 = scmp.ne.s32.totalorder %s20, %s22
    %p29 = scmp.eq.s32.totalorder %s17, 1
    %p30 = por %p28, %p29
    %p31 = scmp.ne.s32.totalorder %s22, %s23
    %p32 = scmp.eq.s32.totalorder %s17, 0
    %p33 = por %p31, %p32
    %p34 = scmp.ne.s32.totalorder %s22, %s23
    %p35 = scmp.eq.s32.totalorder %s18, 1
    %p36 = por %p34, %p35
    %p38 = scmp.ne.s32.totalorder %s23, %s37
    %p39 = scmp.eq.s32.totalorder %s18, 0
    %p40 = por %p38, %p39
    %s41 = ssub.s32 %s12, %s19
    %p42 = scmp.eq.s32.totalorder %s41, 0
    %s44 = sadd.s32 %s43, 1
    %s45 = scalar_select %p42, %s43, %s44
    %p48 = pneg %p42
    %p49 = scmp.eq.s32.totalorder %s12, 1
    %p50 = por %p48, %p49
    %p51 = scmp.ne.s32.totalorder %s43, %s46
    %p52 = scmp.eq.s32.totalorder %s12, 0
    %p53 = por %p51, %p52
    %p54 = scmp.ne.s32.totalorder %s43, %s46
    %p55 = scmp.eq.s32.totalorder %s17, 1
    %p56 = por %p54, %p55
    %p57 = scmp.ne.s32.totalorder %s46, %s47
    %p58 = scmp.eq.s32.totalorder %s17, 0
    %p59 = por %p57, %p58
    %p60 = scmp.ne.s32.totalorder %s46, %s47
    %p61 = scmp.eq.s32.totalorder %s18, 1
    %p62 = por %p60, %p61
    %p64 = scmp.ne.s32.totalorder %s47, %s63
    %p65 = scmp.eq.s32.totalorder %s18, 0
    %p66 = por %p64, %p65
    %s68 = sadd.s32 %s67, 1
    %p71 = scmp.eq.s32.totalorder %s12, 1
    %p72 = scmp.ne.s32.totalorder %s67, %s69
    %p73 = scmp.eq.s32.totalorder %s12, 0
    %p74 = por %p72, %p73
    %p75 = scmp.ne.s32.totalorder %s67, %s69
    %p76 = scmp.eq.s32.totalorder %s17, 1
    %p77 = por %p75, %p76
    %p78 = scmp.ne.s32.totalorder %s69, %s70
    %p79 = scmp.eq.s32.totalorder %s17, 0
    %p80 = por %p78, %p79
    %p81 = scmp.ne.s32.totalorder %s69, %s70
    %p82 = scmp.eq.s32.totalorder %s18, 1
    %p83 = por %p81, %p82
    %p85 = scmp.ne.s32.totalorder %s70, %s84
    %p86 = scmp.eq.s32.totalorder %s18, 0
    %p87 = por %p85, %p86
    %s89 = sadd.s32 %s88, 1
    %p92 = scmp.eq.s32.totalorder %s12, 1
    %p93 = scmp.ne.s32.totalorder %s88, %s90
    %p94 = scmp.eq.s32.totalorder %s12, 0
    %p95 = por %p93, %p94
    %p96 = scmp.ne.s32.totalorder %s88, %s90
    %p97 = scmp.eq.s32.totalorder %s17, 1
    %p98 = por %p96, %p97
    %p99 = scmp.ne.s32.totalorder %s90, %s91
    %p100 = scmp.eq.s32.totalorder %s17, 0
    %p101 = por %p99, %p100
    %p102 = scmp.ne.s32.totalorder %s90, %s91
    %p103 = scmp.eq.s32.totalorder %s18, 1
    %p104 = por %p102, %p103
    %p106 = scmp.ne.s32.totalorder %s91, %s105
    %p107 = scmp.eq.s32.totalorder %s18, 0
    %p108 = por %p106, %p107
    %s110 = sadd.s32 %s109, 1
    %p113 = scmp.eq.s32.totalorder %s12, 1
    %p114 = scmp.ne.s32.totalorder %s109, %s111
    %p115 = scmp.eq.s32.totalorder %s12, 0
    %p116 = por %p114, %p115
    %p117 = scmp.ne.s32.totalorder %s109, %s111
    %p118 = scmp.eq.s32.totalorder %s17, 1
    %p119 = por %p117, %p118
    %p120 = scmp.ne.s32.totalorder %s111, %s112
    %p121 = scmp.eq.s32.totalorder %s17, 0
    %p122 = por %p120, %p121
    %p123 = scmp.ne.s32.totalorder %s111, %s112
    %p124 = scmp.eq.s32.totalorder %s18, 1
    %p125 = por %p123, %p124
    %p127 = scmp.ne.s32.totalorder %s112, %s126
    %p128 = scmp.eq.s32.totalorder %s18, 0
    %p129 = por %p127, %p128
    %s131 = sadd.s32 %s130, 1
    %p134 = scmp.eq.s32.totalorder %s12, 1
    %p135 = scmp.ne.s32.totalorder %s130, %s132
    %p136 = scmp.eq.s32.totalorder %s12, 0
    %p137 = por %p135, %p136
    %p138 = scmp.ne.s32.totalorder %s130, %s132
    %p139 = scmp.eq.s32.totalorder %s17, 1
    %p140 = por %p138, %p139
    %p141 = scmp.ne.s32.totalorder %s132, %s133
    %p142 = scmp.eq.s32.totalorder %s17, 0
    %p143 = por %p141, %p142
    %p144 = scmp.ne.s32.totalorder %s132, %s133
    %p145 = scmp.eq.s32.totalorder %s18, 1
    %p146 = por %p144, %p145
    %p148 = scmp.ne.s32.totalorder %s133, %s147
    %p149 = scmp.eq.s32.totalorder %s18, 0
    %p150 = por %p148, %p149
    %s151 = ssub.s32 %s12, %s19
    %p152 = scmp.eq.s32.totalorder %s151, 0
    %s154 = sadd.s32 %s153, 1
    %s155 = scalar_select %p152, %s153, %s154
    %p158 = pneg %p152
    %p159 = scmp.eq.s32.totalorder %s12, 1
    %p160 = por %p158, %p159
    %p161 = scmp.ne.s32.totalorder %s153, %s156
    %p162 = scmp.eq.s32.totalorder %s12, 0
    %p163 = por %p161, %p162
    %p164 = scmp.ne.s32.totalorder %s153, %s156
    %p165 = scmp.eq.s32.totalorder %s17, 1
    %p166 = por %p164, %p165
    %p167 = scmp.ne.s32.totalorder %s156, %s157
    %p168 = scmp.eq.s32.totalorder %s17, 0
    %p169 = por %p167, %p168
    %p170 = scmp.ne.s32.totalorder %s156, %s157
    %p171 = scmp.eq.s32.totalorder %s18, 1
    %p172 = por %p170, %p171
    %p174 = scmp.ne.s32.totalorder %s157, %s173
    %p175 = scmp.eq.s32.totalorder %s18, 0
    %p176 = por %p174, %p175
    %p177 = scmp.le.s32.totalorder 1, %s12
    %p178 = scmp.lt.s32.totalorder %s12, 3
    %p179 = pnand %p177, %p178
    %p180 = pneg %p179
    // Predicated region
    $region9: #{resblock_forward.1} parent=5 // pred_check
      _
    $region10: #{resblock_forward.1} parent=5 // pred_check_branch
      %182 = sbr.rel (%p179) target = $region12
    $region11: #{resblock_forward.1} parent=5 // pred_region
      %s183 = ssub.s32 %s12, 1
      // Predicated region
      $region13: #{resblock_forward.1} parent=11 // pred_check
        %p184 = pneg %p33
      $region14: #{resblock_forward.1} parent=11 // pred_check_branch
        %186 = sbr.rel (%p184) target = $region16
      $region15: #{resblock_forward.1} parent=11 // pred_region
        _
      $region16: #{resblock_forward.1} parent=11 // pred_fallthru
        _
      // Predicated region
      $region17: #{resblock_forward.1} parent=11 // pred_check
        %p187 = pneg %p80
      $region18: #{resblock_forward.1} parent=11 // pred_check_branch
        %189 = sbr.rel (%p187) target = $region20
      $region19: #{resblock_forward.1} parent=11 // pred_region
        _
      $region20: #{resblock_forward.1} parent=11 // pred_fallthru
        _
      // Predicated region
      $region21: #{resblock_forward.1} parent=11 // pred_check
        %p190 = pneg %p101
      $region22: #{resblock_forward.1} parent=11 // pred_check_branch
        %192 = sbr.rel (%p190) target = $region24
      $region23: #{resblock_forward.1} parent=11 // pred_region
        _
      $region24: #{resblock_forward.1} parent=11 // pred_fallthru
        _
      // Predicated region
      $region25: #{resblock_forward.1} parent=11 // pred_check
        %p193 = pneg %p122
      $region26: #{resblock_forward.1} parent=11 // pred_check_branch
        %195 = sbr.rel (%p193) target = $region28
      $region27: #{resblock_forward.1} parent=11 // pred_region
        _
      $region28: #{resblock_forward.1} parent=11 // pred_fallthru
        _
      // Predicated region
      $region29: #{resblock_forward.1} parent=11 // pred_check
        %p196 = pneg %p143
      $region30: #{resblock_forward.1} parent=11 // pred_check_branch
        %198 = sbr.rel (%p196) target = $region32
      $region31: #{resblock_forward.1} parent=11 // pred_region
        _
      $region32: #{resblock_forward.1} parent=11 // pred_fallthru
        _
    $region12: #{resblock_forward.1} parent=5 // pred_fallthru
      _
    %p199 = scmp.lt.s32.totalorder %s12, 2
    // Predicated region
    $region33: #{resblock_forward.1} parent=5 // pred_check
      %p200 = pneg %p199
    $region34: #{resblock_forward.1} parent=5 // pred_check_branch
      %202 = sbr.rel (%p200) target = $region36
    $region35: #{resblock_forward.1} parent=5 // pred_region
      // Predicated region
      $region37: #{resblock_forward.1} parent=35 // pred_check
        %p203 = pneg %p53
      $region38: #{resblock_forward.1} parent=35 // pred_check_branch
        %205 = sbr.rel (%p203) target = $region40
      $region39: #{resblock_forward.1} parent=35 // pred_region
        %p206 = scmp.lt.s32.totalorder %s12, 1
        %s207 = scalar_select %p206, %s12, 1
        %s208 = smul.addr %s207, 2
        %s209 = smul.addr %s208, 8
        %s210 = scalar_lea.vmem %s1, %s209
      $region40: #{resblock_forward.1} parent=35 // pred_fallthru
        _
    $region36: #{resblock_forward.1} parent=5 // pred_fallthru
      _
    %p211 = scmp.le.s32.totalorder 1, %s12
    %p212 = scmp.lt.s32.totalorder %s12, 3
    %p213 = pnand %p211, %p212
    %p214 = pneg %p213
    // Predicated region
    $region41: #{resblock_forward.1} parent=5 // pred_check
      _
    $region42: #{resblock_forward.1} parent=5 // pred_check_branch
      %216 = sbr.rel (%p213) target = $region44
    $region43: #{resblock_forward.1} parent=5 // pred_region
      %s217 = ssub.s32 %s12, 1
      %p218 = pneg %p33
      %p219 = pneg %p30
      %p220 = scmp.lt.s32.totalorder %s17, 1
      %s221 = scalar_select %p220, %s17, 1
      %s222 = smul.addr %s221, 2
      %s223 = smul.addr %s222, 8
      %s224 = scalar_lea.vmem %s1, %s223
      %p225 = pneg %p59
      %p226 = pneg %p56
      %p227 = pneg %p80
      %p228 = pneg %p77
      %p229 = pneg %p101
      %p230 = pneg %p98
      %p231 = pneg %p122
      %p232 = pneg %p119
      %p233 = pneg %p143
      %p234 = pneg %p140
      %p235 = pneg %p169
      %p236 = pneg %p166
      %p237 = scmp.lt.s32.totalorder %s17, 1
      %s238 = scalar_select %p237, %s17, 1
      %s239 = smul.addr %s238, 2
      %s240 = smul.addr %s239, 4
      %s241 = scalar_lea.vmem %s6, %s240
      %p242 = scmp.lt.s32.totalorder %s17, 1
      %s243 = scalar_select %p242, %s17, 1
      %s244 = smul.addr %s243, 2
      %s245 = smul.addr %s244, 8
      %s246 = scalar_lea.vmem %s1, %s245
      %p247 = scmp.lt.s32.totalorder %s17, 1
      %s248 = scalar_select %p247, %s17, 1
      %s249 = smul.addr %s248, 2
      %s250 = smul.addr %s249, 4
      %s251 = scalar_lea.vmem %s6, %s250
      %v252 = vld [vmem:[%s246] sm:$0xff]
      %v253 = vld [vmem:[%s246 + $0x8] sm:$0xff]
      %254 = vrot.lane.b32.xlu0 %v252, 17
      %v255 = vpop.permute.xlu0 %254
      %256 = vrot.lane.b32.xlu0 %v253, 17
      %v257 = vpop.permute.xlu0 %256
      %v258 = vlaneseq
      %v259 = vand.u32 %v258, 127
      %vm260 = vcmp.lt.s32.totalorder %v259, 17
      %v261 = vsel %vm260, %v255, %v257
      %v262 = vsel %vm260, %v257, %v255
      %v263 = vld [vmem:[%s0] ss:$8 sm:$0x3]
      %v265 = vlaneseq
      %v266 = vshrl.u32 %v265, 7
      %v267 = vsub.s32 0, %v266
      %v268 = vrot.slane %v263, %v267
      %v269 = vlaneseq
      %v270 = vshrl.u32 %v269, 7
      %v271 = vsub.s32 1, %v270
      %v272 = vrot.slane %v263, %v271
      %v275 = vmul.f32 %v262, %v268
      %v276 = vmul.f32 %v261, %v272
      %277 = vst [vmem:[#allocation2] sm:$0xff] %v275
      %278 = vst [vmem:[#allocation2 + $0x8] sm:$0xff] %v276
      %279 = vrot.lane.b32.xlu0 %v252, 16
      %v280 = vpop.permute.xlu0 %279
      %281 = vrot.lane.b32.xlu0 %v253, 16
      %v282 = vpop.permute.xlu0 %281
      %vm283 = vcmp.lt.s32.totalorder %v259, 16
      %v284 = vsel %vm283, %v280, %v282
      %v285 = vsel %vm283, %v282, %v280
      %s286 = scalar_lea.vmem %s0, 1
      %v287 = vld [vmem:[%s286] ss:$8 sm:$0x3]
      %v289 = vlaneseq
      %v290 = vshrl.u32 %v289, 7
      %v291 = vsub.s32 0, %v290
      %v292 = vrot.slane %v287, %v291
      %v293 = vlaneseq
      %v294 = vshrl.u32 %v293, 7
      %v295 = vsub.s32 1, %v294
      %v296 = vrot.slane %v287, %v295
      %v299 = vmul.f32 %v285, %v292
      %v300 = vmul.f32 %v284, %v296
      %301 = vst [vmem:[#allocation2 + $0x10] sm:$0xff] %v299
      %302 = vst [vmem:[#allocation2 + $0x18] sm:$0xff] %v300
      %303 = vrot.lane.b32.xlu0 %v252, 15
      %v304 = vpop.permute.xlu0 %303
      %305 = vrot.lane.b32.xlu0 %v253, 15
      %v306 = vpop.permute.xlu0 %305
      %vm307 = vcmp.lt.s32.totalorder %v259, 15
      %v308 = vsel %vm307, %v304, %v306
      %v309 = vsel %vm307, %v306, %v304
      %s310 = scalar_lea.vmem %s0, 2
      %v311 = vld [vmem:[%s310] ss:$8 sm:$0x3]
      %v313 = vlaneseq
      %v314 = vshrl.u32 %v313, 7
      %v315 = vsub.s32 0, %v314
      %v316 = vrot.slane %v311, %v315
      %v317 = vlaneseq
      %v318 = vshrl.u32 %v317, 7
      %v319 = vsub.s32 1, %v318
      %v320 = vrot.slane %v311, %v319
      %v323 = vmul.f32 %v309, %v316
      %v324 = vmul.f32 %v308, %v320
      %325 = vst [vmem:[#allocation2 + $0x20] sm:$0xff] %v323
      %326 = vst [vmem:[#allocation2 + $0x28] sm:$0xff] %v324
      %327 = vrot.lane.b32.xlu0 %v252, 1
      %v328 = vpop.permute.xlu0 %327
      %329 = vrot.lane.b32.xlu0 %v253, 1
      %v330 = vpop.permute.xlu0 %329
      %vm331 = vcmp.lt.s32.totalorder %v259, 1
      %v332 = vsel %vm331, %v328, %v330
      %v333 = vsel %vm331, %v330, %v328
      %s334 = scalar_lea.vmem %s0, 3
      %v335 = vld [vmem:[%s334] ss:$8 sm:$0x3]
      %v337 = vlaneseq
      %v338 = vshrl.u32 %v337, 7
      %v339 = vsub.s32 0, %v338
      %v340 = vrot.slane %v335, %v339
      %v341 = vlaneseq
      %v342 = vshrl.u32 %v341, 7
      %v343 = vsub.s32 1, %v342
      %v344 = vrot.slane %v335, %v343
      %v347 = vmul.f32 %v333, %v340
      %v348 = vmul.f32 %v332, %v344
      %349 = vst [vmem:[#allocation2 + $0x30] sm:$0xff] %v347
      %350 = vst [vmem:[#allocation2 + $0x38] sm:$0xff] %v348
      %351 = vst [vmem:[#allocation2 + $0x40] sm:$0xff] %v252
      %352 = vst [vmem:[#allocation2 + $0x48] sm:$0xff] %v253
      %353 = vrot.lane.b32.xlu0 %v252, 127
      %v354 = vpop.permute.xlu0 %353
      %355 = vrot.lane.b32.xlu0 %v253, 127
      %v356 = vpop.permute.xlu0 %355
      %vm357 = vcmp.lt.s32.totalorder %v259, 127
      %v358 = vsel %vm357, %v354, %v356
      %v359 = vsel %vm357, %v356, %v354
      %s360 = scalar_lea.vmem %s0, 5
      %v361 = vld [vmem:[%s360] ss:$8 sm:$0x3]
      %v363 = vlaneseq
      %v364 = vshrl.u32 %v363, 7
      %v365 = vsub.s32 0, %v364
      %v366 = vrot.slane %v361, %v365
      %v367 = vlaneseq
      %v368 = vshrl.u32 %v367, 7
      %v369 = vsub.s32 1, %v368
      %v370 = vrot.slane %v361, %v369
      %v373 = vmul.f32 %v358, %v366
      %v374 = vmul.f32 %v359, %v370
      %375 = vst [vmem:[#allocation2 + $0x50] sm:$0xff] %v373
      %376 = vst [vmem:[#allocation2 + $0x58] sm:$0xff] %v374
      %377 = vrot.lane.b32.xlu0 %v252, 113
      %v378 = vpop.permute.xlu0 %377
      %379 = vrot.lane.b32.xlu0 %v253, 113
      %v380 = vpop.permute.xlu0 %379
      %vm381 = vcmp.lt.s32.totalorder %v259, 113
      %v382 = vsel %vm381, %v378, %v380
      %v383 = vsel %vm381, %v380, %v378
      %s384 = scalar_lea.vmem %s0, 6
      %v385 = vld [vmem:[%s384] ss:$8 sm:$0x3]
      %v387 = vlaneseq
      %v388 = vshrl.u32 %v387, 7
      %v389 = vsub.s32 0, %v388
      %v390 = vrot.slane %v385, %v389
      %v391 = vlaneseq
      %v392 = vshrl.u32 %v391, 7
      %v393 = vsub.s32 1, %v392
      %v394 = vrot.slane %v385, %v393
      %v397 = vmul.f32 %v382, %v390
      %v398 = vmul.f32 %v383, %v394
      %399 = vst [vmem:[#allocation2 + $0x60] sm:$0xff] %v397
      %400 = vst [vmem:[#allocation2 + $0x68] sm:$0xff] %v398
      %401 = vrot.lane.b32.xlu0 %v252, 112
      %v402 = vpop.permute.xlu0 %401
      %403 = vrot.lane.b32.xlu0 %v253, 112
      %v404 = vpop.permute.xlu0 %403
      %vm405 = vcmp.lt.s32.totalorder %v259, 112
      %v406 = vsel %vm405, %v402, %v404
      %v407 = vsel %vm405, %v404, %v402
      %s408 = scalar_lea.vmem %s0, 7
      %v409 = vld [vmem:[%s408] ss:$8 sm:$0x3]
      %v411 = vlaneseq
      %v412 = vshrl.u32 %v411, 7
      %v413 = vsub.s32 0, %v412
      %v414 = vrot.slane %v409, %v413
      %v415 = vlaneseq
      %v416 = vshrl.u32 %v415, 7
      %v417 = vsub.s32 1, %v416
      %v418 = vrot.slane %v409, %v417
      %v421 = vmul.f32 %v406, %v414
      %v422 = vmul.f32 %v407, %v418
      %423 = vst [vmem:[#allocation2 + $0x70] sm:$0xff] %v421
      %424 = vst [vmem:[#allocation2 + $0x78] sm:$0xff] %v422
      %425 = vrot.lane.b32.xlu0 %v252, 111
      %v426 = vpop.permute.xlu0 %425
      %427 = vrot.lane.b32.xlu0 %v253, 111
      %v428 = vpop.permute.xlu0 %427
      %vm429 = vcmp.lt.s32.totalorder %v259, 111
      %v430 = vsel %vm429, %v426, %v428
      %v431 = vsel %vm429, %v428, %v426
      %s432 = scalar_lea.vmem %s0, 16
      %v433 = vld [vmem:[%s432] ss:$8 sm:$0x3]
      %v435 = vlaneseq
      %v436 = vshrl.u32 %v435, 7
      %v437 = vsub.s32 0, %v436
      %v438 = vrot.slane %v433, %v437
      %v439 = vlaneseq
      %v440 = vshrl.u32 %v439, 7
      %v441 = vsub.s32 1, %v440
      %v442 = vrot.slane %v433, %v441
      %v445 = vmul.f32 %v430, %v438
      %v446 = vmul.f32 %v431, %v442
      %447 = vst [vmem:[#allocation2 + $0x80] sm:$0xff] %v445
      %448 = vst [vmem:[#allocation2 + $0x88] sm:$0xff] %v446
      %v449 = vld [vmem:[%s2] sm:$0xff]
      %v450 = vld [vmem:[#allocation2] sm:$0xff]
      %v451 = vld [vmem:[#allocation2 + $0x8] sm:$0xff]
      %v452 = vld [vmem:[#allocation2 + $0x10] sm:$0xff]
      %v453 = vld [vmem:[#allocation2 + $0x18] sm:$0xff]
      %v454 = vld [vmem:[#allocation2 + $0x20] sm:$0xff]
      %v455 = vld [vmem:[#allocation2 + $0x28] sm:$0xff]
      %v456 = vld [vmem:[#allocation2 + $0x30] sm:$0xff]
      %v457 = vld [vmem:[#allocation2 + $0x38] sm:$0xff]
      %v458 = vld [vmem:[#allocation2 + $0x40] sm:$0xff]
      %v459 = vld [vmem:[#allocation2 + $0x48] sm:$0xff]
      %v460 = vld [vmem:[#allocation2 + $0x50] sm:$0xff]
      %v461 = vld [vmem:[#allocation2 + $0x58] sm:$0xff]
      %v462 = vld [vmem:[#allocation2 + $0x60] sm:$0xff]
      %v463 = vld [vmem:[#allocation2 + $0x68] sm:$0xff]
      %v464 = vld [vmem:[#allocation2 + $0x70] sm:$0xff]
      %v465 = vld [vmem:[#allocation2 + $0x78] sm:$0xff]
      %v466 = vld [vmem:[#allocation2 + $0x80] sm:$0xff]
      %v467 = vld [vmem:[#allocation2 + $0x88] sm:$0xff]
      %v468 = vld [vmem:[%s3] sm:$0xff]
      %470 = vset.pattern.permute.xlu0 0
      %471 = vperm.xlu0 %470, %v468
      %v472 = vpop.permute.xlu0 %471
      %vm474 = vcmask 588800
      %v476 = vsel %vm474, %v449, 0
      %478 = vmatprep.subr.mxu0 %v451
      %479 = vmatpush1.msra.mxu0 %v450
      %480 = vmatprep.subr.mxu0 %v453
      %481 = vmatpush1.msra.mxu0 %v452
      %482 = vmatprep.subr.mxu0 %v455
      %483 = vmatpush1.msra.mxu0 %v454
      %484 = vmatprep.subr.mxu0 %v457
      %485 = vmatpush1.msra.mxu0 %v456
      %486 = vmatprep.subr.mxu0 %v459
      %487 = vmatpush1.msra.mxu0 %v458
      %488 = vmatprep.subr.mxu0 %v461
      %489 = vmatpush1.msra.mxu0 %v460
      %490 = vmatprep.subr.mxu0 %v463
      %491 = vmatpush1.msra.mxu0 %v462
      %492 = vmatprep.subr.mxu0 %v465
      %493 = vmatpush1.msra.mxu0 %v464
      %494 = vmatprep.subr.mxu0 %v467
      %495 = vmatpush1.msra.mxu0 %v466
      %496 = vmatprep.subr.mxu0 0.0
      %497 = vmatpush1.msra.mxu0 0.0
      %498 = vmatprep.subr.mxu0 0.0
      %499 = vmatpush1.msra.mxu0 0.0
      %500 = vmatprep.subr.mxu0 0.0
      %501 = vmatpush1.msra.mxu0 0.0
      %502 = vmatprep.subr.mxu0 0.0
      %503 = vmatpush1.msra.mxu0 0.0
      %504 = vmatprep.subr.mxu0 0.0
      %505 = vmatpush1.msra.mxu0 0.0
      %506 = vmatprep.subr.mxu0 0.0
      %507 = vmatpush1.msra.mxu0 0.0
      %508 = vmatprep.subr.mxu0 0.0
      %509 = vmatpush1.msra.mxu0 0.0
      %510 = vmatprep.subr.mxu0 0.0
      %511 = vmatpush1.msra.mxu0 0.0
      %512 = vmatprep.subr.mxu0 0.0
      %513 = vmatpush1.msra.mxu0 0.0
      %514 = vmatprep.subr.mxu0 0.0
      %515 = vmatpush1.msra.mxu0 0.0
      %516 = vmatprep.subr.mxu0 0.0
      %517 = vmatpush1.msra.mxu0 0.0
      %518 = vmatprep.subr.mxu0 0.0
      %519 = vmatpush1.msra.mxu0 0.0
      %520 = vmatprep.subr.mxu0 0.0
      %521 = vmatpush1.msra.mxu0 0.0
      %522 = vmatprep.subr.mxu0 0.0
      %523 = vmatpush1.msra.mxu0 0.0
      %524 = vmatprep.subr.mxu0 0.0
      %525 = vmatpush1.msra.mxu0 0.0
      %526 = vmatprep.subr.mxu0 0.0
      %527 = vmatpush1.msra.mxu0 0.0
      %528 = vmatprep.subr.mxu0 0.0
      %529 = vmatpush1.msra.mxu0 0.0
      %530 = vmatprep.subr.mxu0 0.0
      %531 = vmatpush1.msra.mxu0 0.0
      %532 = vmatprep.subr.mxu0 0.0
      %533 = vmatpush1.msra.mxu0 0.0
      %534 = vmatprep.subr.mxu0 0.0
      %535 = vmatpush1.msra.mxu0 0.0
      %536 = vmatprep.subr.mxu0 0.0
      %537 = vmatpush1.msra.mxu0 0.0
      %538 = vmatprep.subr.mxu0 0.0
      %539 = vmatpush1.msra.mxu0 0.0
      %540 = vmatprep.subr.mxu0 0.0
      %541 = vmatpush1.msra.mxu0 0.0
      %542 = vmatprep.mubr.f32.mxu0 0.0
      %543 = vmatmul.mubr.f32.gmra.mrb[0].mxu0 %v476
      %v544 = vpop.f32.mrb[0].mxu0
      %v545 = vadd.f32 %v472, %v544
      %v546 = vpop.f32.mrb[0].mxu0
      %v547 = vadd.f32 %v472, %v546
      %548 = vdwg.mxu0
      %v549 = vmax.f32 %v545, 0.0
      %v550 = vmax.f32 %v547, 0.0
      %551 = vrot.lane.b32.xlu0 %v549, 17
      %v552 = vpop.permute.xlu0 %551
      %553 = vrot.lane.b32.xlu0 %v550, 17
      %v554 = vpop.permute.xlu0 %553
      %v555 = vsel %vm260, %v552, %v554
      %v556 = vsel %vm260, %v554, %v552
      %v557 = vld [vmem:[%s0] ss:$8 sm:$0x3]
      %v559 = vlaneseq
      %v560 = vshrl.u32 %v559, 7
      %v561 = vsub.s32 0, %v560
      %v562 = vrot.slane %v557, %v561
      %v563 = vlaneseq
      %v564 = vshrl.u32 %v563, 7
      %v565 = vsub.s32 1, %v564
      %v566 = vrot.slane %v557, %v565
      %v569 = vmul.f32 %v556, %v562
      %v570 = vmul.f32 %v555, %v566
      %571 = vst [vmem:[#allocation2] sm:$0xff] %v569
      %572 = vst [vmem:[#allocation2 + $0x8] sm:$0xff] %v570
      %573 = vrot.lane.b32.xlu0 %v549, 16
      %v574 = vpop.permute.xlu0 %573
      %575 = vrot.lane.b32.xlu0 %v550, 16
      %v576 = vpop.permute.xlu0 %575
      %v577 = vsel %vm283, %v574, %v576
      %v578 = vsel %vm283, %v576, %v574
      %v579 = vld [vmem:[%s286] ss:$8 sm:$0x3]
      %v581 = vlaneseq
      %v582 = vshrl.u32 %v581, 7
      %v583 = vsub.s32 0, %v582
      %v584 = vrot.slane %v579, %v583
      %v585 = vlaneseq
      %v586 = vshrl.u32 %v585, 7
      %v587 = vsub.s32 1, %v586
      %v588 = vrot.slane %v579, %v587
      %v591 = vmul.f32 %v578, %v584
      %v592 = vmul.f32 %v577, %v588
      %593 = vst [vmem:[#allocation2 + $0x10] sm:$0xff] %v591
      %594 = vst [vmem:[#allocation2 + $0x18] sm:$0xff] %v592
      %595 = vrot.lane.b32.xlu0 %v549, 15
      %v596 = vpop.permute.xlu0 %595
      %597 = vrot.lane.b32.xlu0 %v550, 15
      %v598 = vpop.permute.xlu0 %597
      %v599 = vsel %vm307, %v596, %v598
      %v600 = vsel %vm307, %v598, %v596
      %v601 = vld [vmem:[%s310] ss:$8 sm:$0x3]
      %v603 = vlaneseq
      %v604 = vshrl.u32 %v603, 7
      %v605 = vsub.s32 0, %v604
      %v606 = vrot.slane %v601, %v605
      %v607 = vlaneseq
      %v608 = vshrl.u32 %v607, 7
      %v609 = vsub.s32 1, %v608
      %v610 = vrot.slane %v601, %v609
      %v613 = vmul.f32 %v600, %v606
      %v614 = vmul.f32 %v599, %v610
      %615 = vst [vmem:[#allocation2 + $0x20] sm:$0xff] %v613
      %616 = vst [vmem:[#allocation2 + $0x28] sm:$0xff] %v614
      %617 = vrot.lane.b32.xlu0 %v549, 1
      %v618 = vpop.permute.xlu0 %617
      %619 = vrot.lane.b32.xlu0 %v550, 1
      %v620 = vpop.permute.xlu0 %619
      %v621 = vsel %vm331, %v618, %v620
      %v622 = vsel %vm331, %v620, %v618
      %v623 = vld [vmem:[%s334] ss:$8 sm:$0x3]
      %v625 = vlaneseq
      %v626 = vshrl.u32 %v625, 7
      %v627 = vsub.s32 0, %v626
      %v628 = vrot.slane %v623, %v627
      %v629 = vlaneseq
      %v630 = vshrl.u32 %v629, 7
      %v631 = vsub.s32 1, %v630
      %v632 = vrot.slane %v623, %v631
      %v635 = vmul.f32 %v622, %v628
      %v636 = vmul.f32 %v621, %v632
      %637 = vst [vmem:[#allocation2 + $0x30] sm:$0xff] %v635
      %638 = vst [vmem:[#allocation2 + $0x38] sm:$0xff] %v636
      %639 = vst [vmem:[#allocation2 + $0x40] sm:$0xff] %v549
      %640 = vst [vmem:[#allocation2 + $0x48] sm:$0xff] %v550
      %641 = vrot.lane.b32.xlu0 %v549, 127
      %v642 = vpop.permute.xlu0 %641
      %643 = vrot.lane.b32.xlu0 %v550, 127
      %v644 = vpop.permute.xlu0 %643
      %v645 = vsel %vm357, %v642, %v644
      %v646 = vsel %vm357, %v644, %v642
      %v647 = vld [vmem:[%s360] ss:$8 sm:$0x3]
      %v649 = vlaneseq
      %v650 = vshrl.u32 %v649, 7
      %v651 = vsub.s32 0, %v650
      %v652 = vrot.slane %v647, %v651
      %v653 = vlaneseq
      %v654 = vshrl.u32 %v653, 7
      %v655 = vsub.s32 1, %v654
      %v656 = vrot.slane %v647, %v655
      %v659 = vmul.f32 %v645, %v652
      %v660 = vmul.f32 %v646, %v656
      %661 = vst [vmem:[#allocation2 + $0x50] sm:$0xff] %v659
      %662 = vst [vmem:[#allocation2 + $0x58] sm:$0xff] %v660
      %663 = vrot.lane.b32.xlu0 %v549, 113
      %v664 = vpop.permute.xlu0 %663
      %665 = vrot.lane.b32.xlu0 %v550, 113
      %v666 = vpop.permute.xlu0 %665
      %v667 = vsel %vm381, %v664, %v666
      %v668 = vsel %vm381, %v666, %v664
      %v669 = vld [vmem:[%s384] ss:$8 sm:$0x3]
      %v671 = vlaneseq
      %v672 = vshrl.u32 %v671, 7
      %v673 = vsub.s32 0, %v672
      %v674 = vrot.slane %v669, %v673
      %v675 = vlaneseq
      %v676 = vshrl.u32 %v675, 7
      %v677 = vsub.s32 1, %v676
      %v678 = vrot.slane %v669, %v677
      %v681 = vmul.f32 %v667, %v674
      %v682 = vmul.f32 %v668, %v678
      %683 = vst [vmem:[#allocation2 + $0x60] sm:$0xff] %v681
      %684 = vst [vmem:[#allocation2 + $0x68] sm:$0xff] %v682
      %685 = vrot.lane.b32.xlu0 %v549, 112
      %v686 = vpop.permute.xlu0 %685
      %687 = vrot.lane.b32.xlu0 %v550, 112
      %v688 = vpop.permute.xlu0 %687
      %v689 = vsel %vm405, %v686, %v688
      %v690 = vsel %vm405, %v688, %v686
      %v691 = vld [vmem:[%s408] ss:$8 sm:$0x3]
      %v693 = vlaneseq
      %v694 = vshrl.u32 %v693, 7
      %v695 = vsub.s32 0, %v694
      %v696 = vrot.slane %v691, %v695
      %v697 = vlaneseq
      %v698 = vshrl.u32 %v697, 7
      %v699 = vsub.s32 1, %v698
      %v700 = vrot.slane %v691, %v699
      %v703 = vmul.f32 %v689, %v696
      %v704 = vmul.f32 %v690, %v700
      %705 = vst [vmem:[#allocation2 + $0x70] sm:$0xff] %v703
      %706 = vst [vmem:[#allocation2 + $0x78] sm:$0xff] %v704
      %707 = vrot.lane.b32.xlu0 %v549, 111
      %v708 = vpop.permute.xlu0 %707
      %709 = vrot.lane.b32.xlu0 %v550, 111
      %v710 = vpop.permute.xlu0 %709
      %v711 = vsel %vm429, %v708, %v710
      %v712 = vsel %vm429, %v710, %v708
      %v713 = vld [vmem:[%s432] ss:$8 sm:$0x3]
      %v715 = vlaneseq
      %v716 = vshrl.u32 %v715, 7
      %v717 = vsub.s32 0, %v716
      %v718 = vrot.slane %v713, %v717
      %v719 = vlaneseq
      %v720 = vshrl.u32 %v719, 7
      %v721 = vsub.s32 1, %v720
      %v722 = vrot.slane %v713, %v721
      %v725 = vmul.f32 %v711, %v718
      %v726 = vmul.f32 %v712, %v722
      %727 = vst [vmem:[#allocation2 + $0x80] sm:$0xff] %v725
      %728 = vst [vmem:[#allocation2 + $0x88] sm:$0xff] %v726
      %v729 = vld [vmem:[%s4] sm:$0xff]
      %v730 = vld [vmem:[#allocation2] sm:$0xff]
      %v731 = vld [vmem:[#allocation2 + $0x8] sm:$0xff]
      %v732 = vld [vmem:[#allocation2 + $0x10] sm:$0xff]
      %v733 = vld [vmem:[#allocation2 + $0x18] sm:$0xff]
      %v734 = vld [vmem:[#allocation2 + $0x20] sm:$0xff]
      %v735 = vld [vmem:[#allocation2 + $0x28] sm:$0xff]
      %v736 = vld [vmem:[#allocation2 + $0x30] sm:$0xff]
      %v737 = vld [vmem:[#allocation2 + $0x38] sm:$0xff]
      %v738 = vld [vmem:[#allocation2 + $0x40] sm:$0xff]
      %v739 = vld [vmem:[#allocation2 + $0x48] sm:$0xff]
      %v740 = vld [vmem:[#allocation2 + $0x50] sm:$0xff]
      %v741 = vld [vmem:[#allocation2 + $0x58] sm:$0xff]
      %v742 = vld [vmem:[#allocation2 + $0x60] sm:$0xff]
      %v743 = vld [vmem:[#allocation2 + $0x68] sm:$0xff]
      %v744 = vld [vmem:[#allocation2 + $0x70] sm:$0xff]
      %v745 = vld [vmem:[#allocation2 + $0x78] sm:$0xff]
      %v746 = vld [vmem:[#allocation2 + $0x80] sm:$0xff]
      %v747 = vld [vmem:[#allocation2 + $0x88] sm:$0xff]
      %v748 = vld [vmem:[%s5] sm:$0xff]
      %750 = vset.pattern.permute.xlu0 0
      %751 = vperm.xlu0 %750, %v748
      %v752 = vpop.permute.xlu0 %751
      %v755 = vsel %vm474, %v729, 0
      %757 = vmatprep.subr.mxu0 %v731
      %758 = vmatpush1.msra.mxu0 %v730
      %759 = vmatprep.subr.mxu0 %v733
      %760 = vmatpush1.msra.mxu0 %v732
      %761 = vmatprep.subr.mxu0 %v735
      %762 = vmatpush1.msra.mxu0 %v734
      %763 = vmatprep.subr.mxu0 %v737
      %764 = vmatpush1.msra.mxu0 %v736
      %765 = vmatprep.subr.mxu0 %v739
      %766 = vmatpush1.msra.mxu0 %v738
      %767 = vmatprep.subr.mxu0 %v741
      %768 = vmatpush1.msra.mxu0 %v740
      %769 = vmatprep.subr.mxu0 %v743
      %770 = vmatpush1.msra.mxu0 %v742
      %771 = vmatprep.subr.mxu0 %v745
      %772 = vmatpush1.msra.mxu0 %v744
      %773 = vmatprep.subr.mxu0 %v747
      %774 = vmatpush1.msra.mxu0 %v746
      %775 = vmatprep.subr.mxu0 0.0
      %776 = vmatpush1.msra.mxu0 0.0
      %777 = vmatprep.subr.mxu0 0.0
      %778 = vmatpush1.msra.mxu0 0.0
      %779 = vmatprep.subr.mxu0 0.0
      %780 = vmatpush1.msra.mxu0 0.0
      %781 = vmatprep.subr.mxu0 0.0
      %782 = vmatpush1.msra.mxu0 0.0
      %783 = vmatprep.subr.mxu0 0.0
      %784 = vmatpush1.msra.mxu0 0.0
      %785 = vmatprep.subr.mxu0 0.0
      %786 = vmatpush1.msra.mxu0 0.0
      %787 = vmatprep.subr.mxu0 0.0
      %788 = vmatpush1.msra.mxu0 0.0
      %789 = vmatprep.subr.mxu0 0.0
      %790 = vmatpush1.msra.mxu0 0.0
      %791 = vmatprep.subr.mxu0 0.0
      %792 = vmatpush1.msra.mxu0 0.0
      %793 = vmatprep.subr.mxu0 0.0
      %794 = vmatpush1.msra.mxu0 0.0
      %795 = vmatprep.subr.mxu0 0.0
      %796 = vmatpush1.msra.mxu0 0.0
      %797 = vmatprep.subr.mxu0 0.0
      %798 = vmatpush1.msra.mxu0 0.0
      %799 = vmatprep.subr.mxu0 0.0
      %800 = vmatpush1.msra.mxu0 0.0
      %801 = vmatprep.subr.mxu0 0.0
      %802 = vmatpush1.msra.mxu0 0.0
      %803 = vmatprep.subr.mxu0 0.0
      %804 = vmatpush1.msra.mxu0 0.0
      %805 = vmatprep.subr.mxu0 0.0
      %806 = vmatpush1.msra.mxu0 0.0
      %807 = vmatprep.subr.mxu0 0.0
      %808 = vmatpush1.msra.mxu0 0.0
      %809 = vmatprep.subr.mxu0 0.0
      %810 = vmatpush1.msra.mxu0 0.0
      %811 = vmatprep.subr.mxu0 0.0
      %812 = vmatpush1.msra.mxu0 0.0
      %813 = vmatprep.subr.mxu0 0.0
      %814 = vmatpush1.msra.mxu0 0.0
      %815 = vmatprep.subr.mxu0 0.0
      %816 = vmatpush1.msra.mxu0 0.0
      %817 = vmatprep.subr.mxu0 0.0
      %818 = vmatpush1.msra.mxu0 0.0
      %819 = vmatprep.subr.mxu0 0.0
      %820 = vmatpush1.msra.mxu0 0.0
      %821 = vmatprep.mubr.f32.mxu0 0.0
      %822 = vmatmul.mubr.f32.gmra.mrb[0].mxu0 %v755
      %v823 = vpop.f32.mrb[0].mxu0
      %v824 = vadd.f32 %v752, %v823
      %v825 = vpop.f32.mrb[0].mxu0
      %v826 = vadd.f32 %v752, %v825
      %827 = vdwg.mxu0
      %v828 = vadd.f32 %v824, %v252
      %v829 = vadd.f32 %v826, %v253
      %v830 = vmax.f32 %v828, 0.0
      %v831 = vmax.f32 %v829, 0.0
      %v834 = vcombine.low %v830, %v831
      %836 = vst [vmem:[%s251] sm:$0xff] %v834
      %p837 = scmp.lt.s32.totalorder %s17, 1
      %s838 = scalar_select %p837, %s17, 1
      %s839 = smul.addr %s838, 2
      %s840 = smul.addr %s839, 4
      %s841 = scalar_lea.vmem %s6, %s840
      // Predicated region
      $region45: #{resblock_forward.1} parent=43 // pred_check
        %p842 = pneg %p166
      $region46: #{resblock_forward.1} parent=43 // pred_check_branch
        %844 = sbr.rel (%p842) target = $region48
      $region47: #{resblock_forward.1} parent=43 // pred_region
        _
      $region48: #{resblock_forward.1} parent=43 // pred_fallthru
        _
    $region44: #{resblock_forward.1} parent=5 // pred_fallthru
      _
    %p845 = scmp.le.s32.totalorder 2, %s12
    // Predicated region
    $region49: #{resblock_forward.1} parent=5 // pred_check
      %p846 = pneg %p845
    $region50: #{resblock_forward.1} parent=5 // pred_check_branch
      %848 = sbr.rel (%p846) target = $region52
    $region51: #{resblock_forward.1} parent=5 // pred_region
      %s849 = ssub.s32 %s12, 2
      // Predicated region
      $region53: #{resblock_forward.1} parent=51 // pred_check
        %p850 = pneg %p172
      $region54: #{resblock_forward.1} parent=51 // pred_check_branch
        %852 = sbr.rel (%p850) target = $region56
      $region55: #{resblock_forward.1} parent=51 // pred_region
        %p853 = scmp.lt.s32.totalorder %s18, 1
        %s854 = scalar_select %p853, %s18, 1
        %s855 = smul.addr %s854, 2
        %s856 = smul.addr %s855, 4
        %s857 = scalar_lea.vmem %s6, %s856
      $region56: #{resblock_forward.1} parent=51 // pred_fallthru
        _
    $region52: #{resblock_forward.1} parent=5 // pred_fallthru
      _
  $region6: #{resblock_forward.1} parent=0 // loop_footer
    %s16 = sadd.s32 1, %s12
  $region7: #{resblock_forward.1} parent=0 // loop_footer_branch
    %11 = sbr.rel target = $region3
  $region8: #{resblock_forward.1} parent=0 // loop_exit
    _

</llo_original>
